<compile_context>
chip_gen: v7x
topology: tpu7x:2x2x1
jax: 0.10.0
libtpu: 0.0.40
codegen_flags: <defaults>
</compile_context>

<pallas_src>
import functools

import jax
import jax.numpy as jnp
from jax import lax
from jax.experimental import pallas as pl
from jax.experimental.pallas import tpu as pltpu

_LANE = 128  # lane width of the reshaped feature axis


def _soft_dice_kernel(logits_ref, labels_ref, inter_ref, m1_ref, m2_ref, *,
                      k_steps, rows, rb, needs_mask):
    """Grid = (parallel split P, reduction chunks K).

    Blocks: logits/labels (N, rb, 128); outputs (1, N, 128) per-sample,
    lane-dense partial sums resident as accumulators across the K axis.
    """
    k = pl.program_id(1)

    @pl.when(k == 0)
    def _():
        inter_ref[...] = jnp.zeros_like(inter_ref)
        m1_ref[...] = jnp.zeros_like(m1_ref)
        m2_ref[...] = jnp.zeros_like(m2_ref)

    x = logits_ref[...].astype(jnp.float32)   # (n, rb, 128)
    y = labels_ref[...].astype(jnp.float32)   # (n, rb, 128)

    # sigmoid(x) == 0.5*(tanh(x/2)+1): one EUP transcendental per element
    # (vs. exp + reciprocal); the extra mul/add ride free VALU slots.
    p = 0.5 * (jnp.tanh(0.5 * x) + 1.0)

    if needs_mask:
        # Static branch: only emitted for ragged row counts / ceil-split
        # overrun.  `valid <= 0` for overrun chunks => everything masked.
        chunk = pl.program_id(0) * k_steps + k
        valid = rows - chunk * rb
        row_ids = lax.broadcasted_iota(jnp.int32, x.shape, 1)
        m = row_ids < valid
        p = jnp.where(m, p, 0.0)
        y = jnp.where(m, y, 0.0)

    # Per-sample partial sums over the sublane (row) axis only; the cross-lane
    # reduction is deferred to the wrapper (done once, outside the kernel).
    inter_ref[...] += jnp.sum(p * y, axis=1)[None]   # (1, n, 128)
    m1_ref[...] += jnp.sum(p, axis=1)[None]
    m2_ref[...] += jnp.sum(y, axis=1)[None]


def _vmem_info():
    """Returns (per-step working-set budget bytes, vmem_limit clamp bytes)."""
    cap = 64 << 20   # conservative default: assume v7x-class 64 MiB / TC
    try:
        info = pltpu.get_tpu_info()
        for attr in ("vmem_capacity_bytes", "vmem_bytes", "vmem_size_bytes"):
            v = getattr(info, attr, None)
            if v:
                cap = int(v)
                break
    except Exception:
        pass
    if cap <= (64 << 20):          # v7x-class
        return 36 << 20, 52 << 20
    return 72 << 20, 100 << 20     # v5e / v6e (128 MiB physical VMEM)


def soft_dice_loss(logits, labels, *, max_rows_per_step=0):
    """logits, labels: [N, C, H, W] -> scalar f32 SoftDiceLoss.

    Feed bf16 logits / int8 or bool labels directly to halve/quarter HBM
    traffic; the kernel upcasts to f32 in-register.  `max_rows_per_step` is a
    test/tuning override for the row-block size (0 = auto).
    """
    return _soft_dice_loss_jit(logits, labels, int(max_rows_per_step))


@functools.partial(jax.jit, static_argnums=(2,))
def _soft_dice_loss_jit(logits, labels, max_rows_per_step):
    n = logits.shape[0]
    d = 1
    for s in logits.shape[1:]:
        d *= s

    lg = logits.reshape(n, d)
    lb = labels.reshape(n, d)

    # Common path: D is a multiple of 128 -> pure reshape, no HBM copy.
    pad = (-d) % _LANE
    if pad:
        # TODO(synk): replace this rare-path pad (one extra HBM copy of both
        # inputs) with flat 2-D blocks + an in-kernel element-count mask; the
        # common path (C*H*W % 128 == 0) never takes this branch.
        lg = jnp.pad(lg, ((0, 0), (0, pad)), constant_values=-1e9)  # sigmoid->~0
        lb = jnp.pad(lb, ((0, 0), (0, pad)), constant_values=0)
    rows = (d + pad) // _LANE
    lg = lg.reshape(n, rows, _LANE)
    lb = lb.reshape(n, rows, _LANE)

    it_pair = jnp.dtype(lg.dtype).itemsize + jnp.dtype(lb.dtype).itemsize

    budget, clamp = _vmem_info()

    # Per-row VMEM cost of one grid step: both input blocks double-buffered
    # plus ~3 block-sized f32 elementwise temporaries (upcasts / sigmoid /
    # products materialized by Mosaic at block granularity).
    # TODO(synk): for very large batch N (hundreds) with narrow labels, add an
    # N-tiling grid axis so rb stays >= 64 and each DMA stripe stays large.
    per_row = n * _LANE * (2 * it_pair + 3 * 4)
    cap_rows = max(8, (budget // per_row) // 8 * 8)
    if max_rows_per_step:
        cap_rows = max(8, min(cap_rows, (max_rows_per_step // 8) * 8))
    rb = rows if rows <= cap_rows else cap_rows

    num_chunks = -(-rows // rb)
    # Leading "parallel" axis: lets the two v7x TensorCores each take half of
    # the reduction; harmless (sequential) on single-core v5e/v6e.
    p_split = 2 if num_chunks >= 2 else 1
    k_steps = -(-num_chunks // p_split)
    needs_mask = (rows % rb != 0) or (p_split * k_steps != num_chunks)

    pair_block = n * rb * _LANE * it_pair
    f32_block = n * rb * _LANE * 4
    vmem_limit = 2 * pair_block + 3 * f32_block + (8 << 20)
    vmem_limit = int(min(clamp, max(32 << 20, vmem_limit)))

    last_chunk = num_chunks - 1

    def in_map(p, k):
        # Clamp so ceil-split overrun steps re-read a valid block (their
        # contribution is zeroed by the in-kernel row mask).
        return (0, jnp.minimum(p * k_steps + k, last_chunk), 0)

    out_map = lambda p, k: (p, 0, 0)
    out_sds = jax.ShapeDtypeStruct((p_split, n, _LANE), jnp.float32)

    kernel = functools.partial(
        _soft_dice_kernel,
        k_steps=k_steps, rows=rows, rb=rb, needs_mask=needs_mask)

    inter_p, m1_p, m2_p = pl.pallas_call(
        kernel,
        out_shape=(out_sds, out_sds, out_sds),
        grid_spec=pltpu.PrefetchScalarGridSpec(
            num_scalar_prefetch=0,
            grid=(p_split, k_steps),
            in_specs=[
                pl.BlockSpec((n, rb, _LANE), in_map),
                pl.BlockSpec((n, rb, _LANE), in_map),
            ],
            out_specs=[
                pl.BlockSpec((1, n, _LANE), out_map),
                pl.BlockSpec((1, n, _LANE), out_map),
                pl.BlockSpec((1, n, _LANE), out_map),
            ],
        ),
        compiler_params=pltpu.CompilerParams(
            dimension_semantics=("parallel", "arbitrary"),
            vmem_limit_bytes=vmem_limit,
        ),
    )(lg, lb)

    # Tiny finalization in XLA: cross-lane + cross-split reduce, then score.
    inter = jnp.sum(inter_p, axis=(0, 2))   # (n,)
    m1s = jnp.sum(m1_p, axis=(0, 2))
    m2s = jnp.sum(m2_p, axis=(0, 2))
    score = 2.0 * (inter + 1.0) / (m1s + m2s + 1.0)
    return (1.0 - jnp.sum(score) / n).astype(jnp.float32)


def soft_dice_loss_ref(logits, labels):
    """Pure-JAX reference matching the PyTorch forward."""
    probs = jax.nn.sigmoid(logits.astype(jnp.float32))
    n = logits.shape[0]
    m1 = probs.reshape(n, -1)
    m2 = labels.reshape(n, -1).astype(jnp.float32)
    inter = jnp.sum(m1 * m2, axis=1)
    score = 2.0 * (inter + 1.0) / (jnp.sum(m1, axis=1) + jnp.sum(m2, axis=1) + 1.0)
    return 1.0 - jnp.sum(score) / n


if __name__ == "__main__":
    key = jax.random.PRNGKey(0)

    # Main check: the canonical small shape (single-chunk fast path).
    k1, k2, k3, k4, k5, k6 = jax.random.split(key, 6)
    N, C, H, W = 2, 4, 16, 16
    logits = jax.random.normal(k1, (N, C, H, W), dtype=jnp.float32)
    labels = (jax.random.uniform(k2, (N, C, H, W)) > 0.5).astype(jnp.float32)
    loss = soft_dice_loss(logits, labels)
    jax.block_until_ready(loss)
    ref = soft_dice_loss_ref(logits, labels)
    assert jnp.allclose(loss, ref, rtol=1e-5, atol=1e-5), (loss, ref)

    # Exercise the multi-chunk / 2-way-split / ragged-tail-mask path at a
    # small size by forcing a tiny row block (rows=12 -> chunks of 8 + 4).
    lg2 = jax.random.normal(k3, (2, 4, 24, 16), dtype=jnp.float32)
    lb2 = (jax.random.uniform(k4, (2, 4, 24, 16)) > 0.5).astype(jnp.float32)
    loss2 = soft_dice_loss(lg2, lb2, max_rows_per_step=8)
    jax.block_until_ready(loss2)
    ref2 = soft_dice_loss_ref(lg2, lb2)
    assert jnp.allclose(loss2, ref2, rtol=1e-5, atol=1e-5), (loss2, ref2)

    # Exercise the ceil-split overrun path (rows=20, rb=8 -> 3 chunks split
    # 2-ways: one fully-masked duplicate step).
    lg3 = jax.random.normal(k5, (2, 4, 40, 16), dtype=jnp.float32)
    lb3 = (jax.random.uniform(k6, (2, 4, 40, 16)) > 0.5).astype(jnp.float32)
    loss3 = soft_dice_loss(lg3, lb3, max_rows_per_step=8)
    jax.block_until_ready(loss3)
    ref3 = soft_dice_loss_ref(lg3, lb3)
    assert jnp.allclose(loss3, ref3, rtol=1e-5, atol=1e-5), (loss3, ref3)

    print("KERNEL_OK")
</pallas_src>

<mosaic_0001>
module attributes {stable_mosaic.version = 11 : i64} {
  func.func @_soft_dice_kernel(%arg0: i32, %arg1: i32, %arg2: memref<2x8x128xf32, #tpu.memory_space<vmem>>, %arg3: memref<2x8x128xf32, #tpu.memory_space<vmem>>, %arg4: memref<1x2x128xf32, #tpu.memory_space<vmem>>, %arg5: memref<1x2x128xf32, #tpu.memory_space<vmem>>, %arg6: memref<1x2x128xf32, #tpu.memory_space<vmem>>) attributes {dimension_semantics = [#tpu.dimension_semantics<parallel>, #tpu.dimension_semantics<arbitrary>], iteration_bounds = array<i64: 1, 1>, scalar_prefetch = 0 : i64, scratch_operands = 0 : i64, tpu.core_type = #tpu.core_type<tc>, window_params = [{transform_indices = @transform_0, window_bounds = array<i64: 2, 8, 128>}, {transform_indices = @transform_1, window_bounds = array<i64: 2, 8, 128>}, {transform_indices = @transform_2, window_bounds = array<i64: 1, 2, 128>}, {transform_indices = @transform_3, window_bounds = array<i64: 1, 2, 128>}, {transform_indices = @transform_4, window_bounds = array<i64: 1, 2, 128>}]} {
    %c0_i32 = arith.constant 0 : i32
    %0 = arith.cmpi eq, %arg1, %c0_i32 : i32
    %1 = arith.extui %0 : i1 to i32
    %c0_i32_0 = arith.constant 0 : i32
    %2 = arith.cmpi ne, %1, %c0_i32_0 : i32
    scf.if %2 {
      %cst_29 = arith.constant 0.000000e+00 : f32
      %28 = vector.broadcast %cst_29 : f32 to vector<1x2x128xf32>
      %c0_30 = arith.constant 0 : index
      %c0_31 = arith.constant 0 : index
      %c0_32 = arith.constant 0 : index
      %29 = vector.load %arg4[%c0_30, %c0_31, %c0_32] : memref<1x2x128xf32, #tpu.memory_space<vmem>>, vector<1x2x128xf32>
      tpu.vector_store %arg4[%c0_30, %c0_31, %c0_32], %28 {strides = array<i32>} : memref<1x2x128xf32, #tpu.memory_space<vmem>>, vector<1x2x128xf32>,
      %cst_33 = arith.constant 0.000000e+00 : f32
      %30 = vector.broadcast %cst_33 : f32 to vector<1x2x128xf32>
      %c0_34 = arith.constant 0 : index
      %c0_35 = arith.constant 0 : index
      %c0_36 = arith.constant 0 : index
      %31 = vector.load %arg5[%c0_34, %c0_35, %c0_36] : memref<1x2x128xf32, #tpu.memory_space<vmem>>, vector<1x2x128xf32>
      tpu.vector_store %arg5[%c0_34, %c0_35, %c0_36], %30 {strides = array<i32>} : memref<1x2x128xf32, #tpu.memory_space<vmem>>, vector<1x2x128xf32>,
      %cst_37 = arith.constant 0.000000e+00 : f32
      %32 = vector.broadcast %cst_37 : f32 to vector<1x2x128xf32>
      %c0_38 = arith.constant 0 : index
      %c0_39 = arith.constant 0 : index
      %c0_40 = arith.constant 0 : index
      %33 = vector.load %arg6[%c0_38, %c0_39, %c0_40] : memref<1x2x128xf32, #tpu.memory_space<vmem>>, vector<1x2x128xf32>
      tpu.vector_store %arg6[%c0_38, %c0_39, %c0_40], %32 {strides = array<i32>} : memref<1x2x128xf32, #tpu.memory_space<vmem>>, vector<1x2x128xf32>,
    } else {
    }
    %c0 = arith.constant 0 : index
    %c0_1 = arith.constant 0 : index
    %c0_2 = arith.constant 0 : index
    %3 = vector.load %arg2[%c0, %c0_1, %c0_2] : memref<2x8x128xf32, #tpu.memory_space<vmem>>, vector<2x8x128xf32>
    %c0_3 = arith.constant 0 : index
    %c0_4 = arith.constant 0 : index
    %c0_5 = arith.constant 0 : index
    %4 = vector.load %arg3[%c0_3, %c0_4, %c0_5] : memref<2x8x128xf32, #tpu.memory_space<vmem>>, vector<2x8x128xf32>
    %cst = arith.constant 5.000000e-01 : f32
    %5 = vector.broadcast %cst : f32 to vector<2x8x128xf32>
    %6 = arith.mulf %5, %3 : vector<2x8x128xf32>
    %7 = math.tanh %6 : vector<2x8x128xf32>
    %cst_6 = arith.constant 1.000000e+00 : f32
    %8 = vector.broadcast %cst_6 : f32 to vector<2x8x128xf32>
    %9 = arith.addf %7, %8 : vector<2x8x128xf32>
    %cst_7 = arith.constant 5.000000e-01 : f32
    %10 = vector.broadcast %cst_7 : f32 to vector<2x8x128xf32>
    %11 = arith.mulf %10, %9 : vector<2x8x128xf32>
    %c0_8 = arith.constant 0 : index
    %c0_9 = arith.constant 0 : index
    %c0_10 = arith.constant 0 : index
    %12 = vector.load %arg4[%c0_8, %c0_9, %c0_10] : memref<1x2x128xf32, #tpu.memory_space<vmem>>, vector<1x2x128xf32>
    %13 = arith.mulf %11, %4 : vector<2x8x128xf32>
    %cst_11 = arith.constant dense<0.000000e+00> : vector<2x128xf32>
    %14 = vector.multi_reduction <add>, %13, %cst_11 [1] : vector<2x8x128xf32> to vector<2x128xf32>
    %15 = vector.shape_cast %14 : vector<2x128xf32> to vector<1x2x128xf32>
    %16 = arith.addf %12, %15 : vector<1x2x128xf32>
    %c0_12 = arith.constant 0 : index
    %c0_13 = arith.constant 0 : index
    %c0_14 = arith.constant 0 : index
    %17 = vector.load %arg4[%c0_12, %c0_13, %c0_14] : memref<1x2x128xf32, #tpu.memory_space<vmem>>, vector<1x2x128xf32>
    tpu.vector_store %arg4[%c0_12, %c0_13, %c0_14], %16 {strides = array<i32>} : memref<1x2x128xf32, #tpu.memory_space<vmem>>, vector<1x2x128xf32>,
    %c0_15 = arith.constant 0 : index
    %c0_16 = arith.constant 0 : index
    %c0_17 = arith.constant 0 : index
    %18 = vector.load %arg5[%c0_15, %c0_16, %c0_17] : memref<1x2x128xf32, #tpu.memory_space<vmem>>, vector<1x2x128xf32>
    %cst_18 = arith.constant dense<0.000000e+00> : vector<2x128xf32>
    %19 = vector.multi_reduction <add>, %11, %cst_18 [1] : vector<2x8x128xf32> to vector<2x128xf32>
    %20 = vector.shape_cast %19 : vector<2x128xf32> to vector<1x2x128xf32>
    %21 = arith.addf %18, %20 : vector<1x2x128xf32>
    %c0_19 = arith.constant 0 : index
    %c0_20 = arith.constant 0 : index
    %c0_21 = arith.constant 0 : index
    %22 = vector.load %arg5[%c0_19, %c0_20, %c0_21] : memref<1x2x128xf32, #tpu.memory_space<vmem>>, vector<1x2x128xf32>
    tpu.vector_store %arg5[%c0_19, %c0_20, %c0_21], %21 {strides = array<i32>} : memref<1x2x128xf32, #tpu.memory_space<vmem>>, vector<1x2x128xf32>,
    %c0_22 = arith.constant 0 : index
    %c0_23 = arith.constant 0 : index
    %c0_24 = arith.constant 0 : index
    %23 = vector.load %arg6[%c0_22, %c0_23, %c0_24] : memref<1x2x128xf32, #tpu.memory_space<vmem>>, vector<1x2x128xf32>
    %cst_25 = arith.constant dense<0.000000e+00> : vector<2x128xf32>
    %24 = vector.multi_reduction <add>, %4, %cst_25 [1] : vector<2x8x128xf32> to vector<2x128xf32>
    %25 = vector.shape_cast %24 : vector<2x128xf32> to vector<1x2x128xf32>
    %26 = arith.addf %23, %25 : vector<1x2x128xf32>
    %c0_26 = arith.constant 0 : index
    %c0_27 = arith.constant 0 : index
    %c0_28 = arith.constant 0 : index
    %27 = vector.load %arg6[%c0_26, %c0_27, %c0_28] : memref<1x2x128xf32, #tpu.memory_space<vmem>>, vector<1x2x128xf32>
    tpu.vector_store %arg6[%c0_26, %c0_27, %c0_28], %26 {strides = array<i32>} : memref<1x2x128xf32, #tpu.memory_space<vmem>>, vector<1x2x128xf32>,
    return
  }
  func.func @transform_0(%arg0: i32, %arg1: i32) -> (i32, i32, i32) {
    %c1_i32 = arith.constant 1 : i32
    %0 = arith.muli %arg0, %c1_i32 : i32
    %1 = arith.addi %0, %arg1 : i32
    %c0_i32 = arith.constant 0 : i32
    %2 = arith.minsi %1, %c0_i32 : i32
    %c0_i32_0 = arith.constant 0 : i32
    %c0_i32_1 = arith.constant 0 : i32
    %c0_i32_2 = arith.constant 0 : i32
    return %c0_i32_0, %2, %c0_i32_1 : i32, i32, i32
  }
  func.func @transform_1(%arg0: i32, %arg1: i32) -> (i32, i32, i32) {
    %c1_i32 = arith.constant 1 : i32
    %0 = arith.muli %arg0, %c1_i32 : i32
    %1 = arith.addi %0, %arg1 : i32
    %c0_i32 = arith.constant 0 : i32
    %2 = arith.minsi %1, %c0_i32 : i32
    %c0_i32_0 = arith.constant 0 : i32
    %c0_i32_1 = arith.constant 0 : i32
    %c0_i32_2 = arith.constant 0 : i32
    return %c0_i32_0, %2, %c0_i32_1 : i32, i32, i32
  }
  func.func @transform_2(%arg0: i32, %arg1: i32) -> (i32, i32, i32) {
    %c0_i32 = arith.constant 0 : i32
    %c0_i32_0 = arith.constant 0 : i32
    %c0_i32_1 = arith.constant 0 : i32
    return %arg0, %c0_i32, %c0_i32_0 : i32, i32, i32
  }
  func.func @transform_3(%arg0: i32, %arg1: i32) -> (i32, i32, i32) {
    %c0_i32 = arith.constant 0 : i32
    %c0_i32_0 = arith.constant 0 : i32
    %c0_i32_1 = arith.constant 0 : i32
    return %arg0, %c0_i32, %c0_i32_0 : i32, i32, i32
  }
  func.func @transform_4(%arg0: i32, %arg1: i32) -> (i32, i32, i32) {
    %c0_i32 = arith.constant 0 : i32
    %c0_i32_0 = arith.constant 0 : i32
    %c0_i32_1 = arith.constant 0 : i32
    return %arg0, %c0_i32, %c0_i32_0 : i32, i32, i32
  }
}

</mosaic_0001>

<llo_original>
// kernel: _soft_dice_loss_jit.1
$region0: #{_soft_dice_loss_jit.1}
  #allocation0 [shape = 'u32[]', space=smem, size = 0x4, offset = 0x4, fixed_abs, tag = 'smem constant byte address 0x4 - core index']
  #allocation1 [shape = 'u32[144,128]{1,0:T(1,128)}', space=vmem, size = 0x12000, scoped, tag = 'internal scratch']
  %s0 = inlined_call_operand.vmem [shape: f32[2,8,128], index: 0, kind: input, shape index: {}]
  %s1 = inlined_call_operand.vmem [shape: f32[2,8,128], index: 1, kind: input, shape index: {}]
  %s2 = inlined_call_operand.vmem [shape: f32[1,2,128], index: 2, kind: output, shape index: {0}]
  %s3 = inlined_call_operand.vmem [shape: f32[1,2,128], index: 3, kind: output, shape index: {1}]
  %s4 = inlined_call_operand.vmem [shape: f32[1,2,128], index: 4, kind: output, shape index: {2}]
  %5 = xla_tuple %s2, %s3, %s4
  %s6 = sld [smem:[#allocation0]]
  $region38: #{_soft_dice_loss_jit.1} parent=0
    _
  %s8 = ssub.s32 1, %s6
  %s9 = scalar_select 0, %s8, %s6
  // Predicated region
  $region2: #{_soft_dice_loss_jit.1} parent=0 // pred_check
    _
  $region3: #{_soft_dice_loss_jit.1} parent=0 // pred_check_branch
    %11 = sbr.rel (0) target = $region5
  $region4: #{_soft_dice_loss_jit.1} parent=0 // pred_region
    %s12 = sadd.s32 0, 0
    %p13 = scmp.lt.s32.totalorder %s12, 0
    %s14 = scalar_select %p13, %s12, 0
    %p15 = scmp.lt.s32.totalorder %s14, 0
    %s16 = scalar_select %p15, %s14, 0
    %s17 = smul.addr %s16, 8
    %s18 = scalar_lea.vmem %s0, %s17
    %s19 = sadd.s32 0, 0
    %p20 = scmp.lt.s32.totalorder %s19, 0
    %s21 = scalar_select %p20, %s19, 0
  $region5: #{_soft_dice_loss_jit.1} parent=0 // pred_fallthru
    _
  // Predicated region
  $region6: #{_soft_dice_loss_jit.1} parent=0 // pred_check
    _
  $region7: #{_soft_dice_loss_jit.1} parent=0 // pred_check_branch
    %23 = sbr.rel (0) target = $region9
  $region8: #{_soft_dice_loss_jit.1} parent=0 // pred_region
    %s24 = sadd.s32 0, 0
    %p25 = scmp.lt.s32.totalorder %s24, 0
    %s26 = scalar_select %p25, %s24, 0
    %p27 = scmp.lt.s32.totalorder %s26, 0
    %s28 = scalar_select %p27, %s26, 0
    %s29 = smul.addr %s28, 8
    %s30 = scalar_lea.vmem %s1, %s29
    %s31 = sadd.s32 0, 0
    %p32 = scmp.lt.s32.totalorder %s31, 0
    %s33 = scalar_select %p32, %s31, 0
  $region9: #{_soft_dice_loss_jit.1} parent=0 // pred_fallthru
    _
  %s34 = sadd.s32 0, 0
  %p35 = scmp.lt.s32.totalorder %s34, 0
  %s36 = scalar_select %p35, %s34, 0
  %p37 = scmp.lt.s32.totalorder %s36, 0
  %s38 = scalar_select %p37, %s36, 0
  %s39 = smul.addr %s38, 8
  %s40 = scalar_lea.vmem %s0, %s39
  %s41 = sadd.s32 0, 0
  %p42 = scmp.lt.s32.totalorder %s41, 0
  %s43 = scalar_select %p42, %s41, 0
  %p44 = scmp.lt.s32.totalorder %s43, 0
  %s45 = scalar_select %p44, %s43, 0
  %s46 = smul.addr %s45, 8
  %s47 = scalar_lea.vmem %s1, %s46
  %s48 = sadd.s32 0, 0
  %p49 = scmp.lt.s32.totalorder %s48, 0
  %s50 = scalar_select %p49, %s48, 0
  %p51 = scmp.lt.s32.totalorder %s50, 0
  %s52 = scalar_select %p51, %s50, 0
  %s53 = smul.addr %s52, 8
  %s54 = scalar_lea.vmem %s0, %s53
  %s55 = sadd.s32 0, 0
  %p56 = scmp.lt.s32.totalorder %s55, 0
  %s57 = scalar_select %p56, %s55, 0
  %s58 = sadd.s32 0, 0
  %p59 = scmp.lt.s32.totalorder %s58, 0
  %s60 = scalar_select %p59, %s58, 0
  %p61 = scmp.lt.s32.totalorder %s60, 0
  %s62 = scalar_select %p61, %s60, 0
  %s63 = smul.addr %s62, 8
  %s64 = scalar_lea.vmem %s1, %s63
  %s65 = sadd.s32 0, 0
  %p66 = scmp.lt.s32.totalorder %s65, 0
  %s67 = scalar_select %p66, %s65, 0
  %p68 = scmp.eq.s32.totalorder 0, 0
  // Predicated region
  $region10: #{_soft_dice_loss_jit.1} parent=0 // pred_check
    %p69 = pneg %p68
  $region11: #{_soft_dice_loss_jit.1} parent=0 // pred_check_branch
    %71 = sbr.rel (%p69) target = $region13
  $region12: #{_soft_dice_loss_jit.1} parent=0 // pred_region
    %72 = vst [vmem:[%s2] sm:$0x3] 0.0
    %73 = vst [vmem:[%s3] sm:$0x3] 0.0
    %74 = vst [vmem:[%s4] sm:$0x3] 0.0
  $region13: #{_soft_dice_loss_jit.1} parent=0 // pred_fallthru
    _
  %v75 = vld [vmem:[%s54] sm:$0xff]
  %v76 = vld [vmem:[%s54 + $0x8] sm:$0xff]
  %v77 = vld [vmem:[%s64] sm:$0xff]
  %v78 = vld [vmem:[%s64 + $0x8] sm:$0xff]
  %v79 = vmul.f32 %v75, 0.5
  %v80 = vmul.f32 %v76, 0.5
  %v81 = vtanh.pop %v79
  %v82 = vtanh.pop %v80
  %v83 = vadd.f32 %v81, 1.0
  %v84 = vadd.f32 %v82, 1.0
  %v85 = vmul.f32 %v83, 0.5
  %v86 = vmul.f32 %v84, 0.5
  %v87 = vld [vmem:[%s2] sm:$0x3]
  %v88 = vmul.f32 %v85, %v77
  %v89 = vmul.f32 %v86, %v78
  %v90 = vrot.slane %v88, 4
  %v91 = vadd.f32 %v88, %v90
  %v92 = vrot.slane %v91, 2
  %v93 = vadd.f32 %v91, %v92
  %v94 = vrot.slane %v93, 1
  %v95 = vadd.f32 %v93, %v94
  %v96 = vrot.slane %v89, 4
  %v97 = vadd.f32 %v89, %v96
  %v98 = vrot.slane %v97, 2
  %v99 = vadd.f32 %v97, %v98
  %v100 = vrot.slane %v99, 1
  %v101 = vadd.f32 %v99, %v100
  %vm104 = vcmask 1041409
  %v105 = vsel %vm104, %v101, %v95
  %v107 = vadd.f32 %v87, %v105
  %108 = vst [vmem:[%s2] sm:$0x3] %v107
  %v109 = vld [vmem:[%s3] sm:$0x3]
  %v110 = vrot.slane %v85, 4
  %v111 = vadd.f32 %v85, %v110
  %v112 = vrot.slane %v111, 2
  %v113 = vadd.f32 %v111, %v112
  %v114 = vrot.slane %v113, 1
  %v115 = vadd.f32 %v113, %v114
  %v116 = vrot.slane %v86, 4
  %v117 = vadd.f32 %v86, %v116
  %v118 = vrot.slane %v117, 2
  %v119 = vadd.f32 %v117, %v118
  %v120 = vrot.slane %v119, 1
  %v121 = vadd.f32 %v119, %v120
  %v124 = vsel %vm104, %v121, %v115
  %v126 = vadd.f32 %v109, %v124
  %127 = vst [vmem:[%s3] sm:$0x3] %v126
  %v128 = vld [vmem:[%s4] sm:$0x3]
  %v129 = vrot.slane %v77, 4
  %v130 = vadd.f32 %v77, %v129
  %v131 = vrot.slane %v130, 2
  %v132 = vadd.f32 %v130, %v131
  %v133 = vrot.slane %v132, 1
  %v134 = vadd.f32 %v132, %v133
  %v135 = vrot.slane %v78, 4
  %v136 = vadd.f32 %v78, %v135
  %v137 = vrot.slane %v136, 2
  %v138 = vadd.f32 %v136, %v137
  %v139 = vrot.slane %v138, 1
  %v140 = vadd.f32 %v138, %v139
  %v143 = vsel %vm104, %v140, %v134
  %v145 = vadd.f32 %v128, %v143
  %146 = vst [vmem:[%s4] sm:$0x3] %v145
  // Predicated region
  $region14: #{_soft_dice_loss_jit.1} parent=0 // pred_check
    _
  $region15: #{_soft_dice_loss_jit.1} parent=0 // pred_check_branch
    %148 = sbr.rel (0) target = $region17
  $region16: #{_soft_dice_loss_jit.1} parent=0 // pred_region
    _
  $region17: #{_soft_dice_loss_jit.1} parent=0 // pred_fallthru
    _
  // Predicated region
  $region18: #{_soft_dice_loss_jit.1} parent=0 // pred_check
    _
  $region19: #{_soft_dice_loss_jit.1} parent=0 // pred_check_branch
    %150 = sbr.rel (0) target = $region21
  $region20: #{_soft_dice_loss_jit.1} parent=0 // pred_region
    _
  $region21: #{_soft_dice_loss_jit.1} parent=0 // pred_fallthru
    _
  // Predicated region
  $region22: #{_soft_dice_loss_jit.1} parent=0 // pred_check
    _
  $region23: #{_soft_dice_loss_jit.1} parent=0 // pred_check_branch
    %152 = sbr.rel (0) target = $region25
  $region24: #{_soft_dice_loss_jit.1} parent=0 // pred_region
    _
  $region25: #{_soft_dice_loss_jit.1} parent=0 // pred_fallthru
    _
  // Predicated region
  $region26: #{_soft_dice_loss_jit.1} parent=0 // pred_check
    _
  $region27: #{_soft_dice_loss_jit.1} parent=0 // pred_check_branch
    %154 = sbr.rel (0) target = $region29
  $region28: #{_soft_dice_loss_jit.1} parent=0 // pred_region
    _
  $region29: #{_soft_dice_loss_jit.1} parent=0 // pred_fallthru
    _
  // Predicated region
  $region30: #{_soft_dice_loss_jit.1} parent=0 // pred_check
    _
  $region31: #{_soft_dice_loss_jit.1} parent=0 // pred_check_branch
    %156 = sbr.rel (0) target = $region33
  $region32: #{_soft_dice_loss_jit.1} parent=0 // pred_region
    _
  $region33: #{_soft_dice_loss_jit.1} parent=0 // pred_fallthru
    _
  // Predicated region
  $region34: #{_soft_dice_loss_jit.1} parent=0 // pred_check
    _
  $region35: #{_soft_dice_loss_jit.1} parent=0 // pred_check_branch
    %158 = sbr.rel (0) target = $region37
  $region36: #{_soft_dice_loss_jit.1} parent=0 // pred_region
    _
  $region37: #{_soft_dice_loss_jit.1} parent=0 // pred_fallthru
    _

</llo_original>
